<compile_context>
chip_gen: v5e
topology: v5e:2x2
jax: 0.10.0
libtpu: 0.0.40
codegen_flags: <defaults>
</compile_context>

<pallas_src>
import functools

import jax
import jax.numpy as jnp
from jax.experimental import pallas as pl
from jax.experimental.pallas import tpu as pltpu


def fm_kernel(bias_ref, w_ref, sparse_t_ref, dense_t_ref, out_ref, *,
              num_fields, factor_dim):
    # bias_ref     : (1,)              SMEM scalar
    # w_ref        : (1, input_dim)    VMEM (same tiny block every grid step)
    # sparse_t_ref : (input_dim, TB)   VMEM, batch on lanes
    # dense_t_ref  : (F*D, TB)         VMEM, batch on lanes, sublane-dense
    # out_ref      : (1, TB)           VMEM, lane-dense output tile
    d0 = dense_t_ref[0:factor_dim, :].astype(jnp.float32)            # (D, TB)
    field_sum = d0
    sum_of_square = d0 * d0
    for f in range(1, num_fields):                                    # static, small
        lo = f * factor_dim
        df = dense_t_ref[lo:lo + factor_dim, :].astype(jnp.float32)   # (D, TB)
        field_sum = field_sum + df
        sum_of_square = sum_of_square + df * df

    square_of_sum = field_sum * field_sum                              # (D, TB)
    y_pairwise = 0.5 * jnp.sum(square_of_sum - sum_of_square,
                               axis=0, keepdims=True)                  # (1, TB)

    y_linear = jnp.dot(w_ref[...].astype(jnp.float32),
                       sparse_t_ref[...].astype(jnp.float32),
                       preferred_element_type=jnp.float32)             # (1, TB)

    out_ref[...] = (y_linear + y_pairwise + bias_ref[0]).astype(out_ref.dtype)


def _vmem_capacity_bytes():
    try:
        cap = getattr(pltpu.get_tpu_info(), "vmem_capacity_bytes", None)
        if cap:
            return int(cap)
    except Exception:
        pass
    return 64 * 1024 * 1024  # conservative (v7x-sized) fallback


def _pick_tile(batch, per_col_bytes):
    """Largest 128-multiple batch tile whose double-buffered working set leaves
    ~2x headroom inside a generation-appropriate scoped VMEM limit."""
    cap = _vmem_capacity_bytes()
    vmem_limit = min(96 * 1024 * 1024, (3 * cap) // 4)  # ~48 MiB v7x, ~96 MiB v5e/v6e
    budget = vmem_limit // 2                             # pipelining headroom
    tb = budget // (2 * per_col_bytes)                   # 2x = double buffering
    tb = (tb // 128) * 128
    tb = max(128, min(8192, tb))
    tb = min(tb, pl.cdiv(batch, 128) * 128)              # don't over-pad tiny batches
    return tb, vmem_limit


def fm_forward(sparse_x, dense_x, weight, bias, *, tb=None,
               cast_inputs_to_bf16=False):
    """FMLayer forward.  sparse_x: (B, input_dim), dense_x: (B, F, D),
    weight: (1, input_dim), bias: (1,).  Returns float32 (B,)."""
    B, input_dim = sparse_x.shape
    Bd, F, D = dense_x.shape
    assert Bd == B

    if cast_inputs_to_bf16:
        sparse_x = sparse_x.astype(jnp.bfloat16)
        dense_x = dense_x.astype(jnp.bfloat16)

    # Layout plumbing: batch on the lane (last) axis, dense collapsed to 2-D.
    # Marked fusible below so XLA can fold the transposes into the input DMAs
    # instead of materializing an extra HBM pass.
    sparse_t = jnp.transpose(sparse_x, (1, 0))                           # (input_dim, B)
    dense_t = jnp.transpose(jnp.reshape(dense_x, (B, F * D)), (1, 0))    # (F*D, B)
    w_row = jnp.reshape(weight, (1, input_dim)).astype(jnp.float32)
    bias = jnp.reshape(bias, (1,)).astype(jnp.float32)

    in_itemsize = jnp.dtype(sparse_t.dtype).itemsize
    per_col_bytes = (input_dim + F * D) * in_itemsize + 4  # + f32 output lane
    auto_tb, vmem_limit = _pick_tile(B, per_col_bytes)
    if tb is None:
        tb = auto_tb
    assert tb % 128 == 0, "batch tile must be a multiple of 128 lanes"

    bytes_in = (sparse_t.size * sparse_t.dtype.itemsize
                + dense_t.size * dense_t.dtype.itemsize
                + input_dim * 4 + 4)
    cost = pl.CostEstimate(
        flops=4 * B * F * D + 2 * B * input_dim + 2 * B,
        transcendentals=0,
        bytes_accessed=bytes_in + B * 4)

    kernel = functools.partial(fm_kernel, num_fields=F, factor_dim=D)
    out = pl.pallas_call(
        kernel,
        out_shape=jax.ShapeDtypeStruct((1, B), jnp.float32),
        grid=(pl.cdiv(B, tb),),
        in_specs=[
            pl.BlockSpec(memory_space=pltpu.SMEM),               # bias scalar
            pl.BlockSpec((1, input_dim), lambda i: (0, 0)),      # weight row
            pl.BlockSpec((input_dim, tb), lambda i: (0, i)),     # sparse_x^T tile
            pl.BlockSpec((F * D, tb), lambda i: (0, i)),         # dense_x^T tile
        ],
        out_specs=pl.BlockSpec((1, tb), lambda i: (0, i)),
        compiler_params=pltpu.CompilerParams(
            dimension_semantics=("parallel",),
            vmem_limit_bytes=vmem_limit,
            allow_input_fusion=[False, False, True, True]),
        cost_estimate=cost,
    )(bias, w_row, sparse_t, dense_t)

    return out[0, :]


def reference_forward(sparse_x, dense_x, weight, bias):
    sparse_x = sparse_x.astype(jnp.float32)
    dense_x = dense_x.astype(jnp.float32)
    y_linear = sparse_x @ jnp.reshape(weight, (-1,)).astype(jnp.float32) + bias[0]
    s = jnp.sum(dense_x, axis=1)
    y_pairwise = 0.5 * jnp.sum(s * s - jnp.sum(dense_x * dense_x, axis=1), axis=1)
    return y_linear + y_pairwise


if __name__ == "__main__":
    batch, input_dim, num_fields, factor_dim = 1000, 32, 4, 16

    key = jax.random.PRNGKey(0)
    k_w, k_sparse, k_dense = jax.random.split(key, 3)

    # nn.Linear(input_dim, 1): weight ~ N(0, 0.01), bias = 0 (per _initialize_weights)
    weight = 0.01 * jax.random.normal(k_w, (1, input_dim), jnp.float32)
    bias = jnp.zeros((1,), jnp.float32)

    # sparse_x: multi-hot-style float tensor; dense_x: (B, num_fields, factor_dim)
    sparse_x = (jax.random.uniform(k_sparse, (batch, input_dim)) < 0.25).astype(jnp.float32)
    dense_x = jax.random.normal(k_dense, (batch, num_fields, factor_dim), jnp.float32)

    ref = reference_forward(sparse_x, dense_x, weight, bias)

    # 1) small explicit tile: exercises a multi-step grid + a partial edge block.
    out_small = jax.block_until_ready(
        fm_forward(sparse_x, dense_x, weight, bias, tb=256))
    assert out_small.shape == (batch,)
    assert jnp.allclose(out_small, ref, atol=1e-4, rtol=1e-4)

    # 2) auto-sized tile (generation-aware VMEM budget), f32 inputs.
    out_auto = jax.block_until_ready(fm_forward(sparse_x, dense_x, weight, bias))
    assert jnp.allclose(out_auto, ref, atol=1e-4, rtol=1e-4)

    # 3) bf16 input path (halves HBM traffic); reference uses the same bf16
    #    quantized values, so only f32 accumulation-order noise remains.
    ref_bf16 = reference_forward(sparse_x.astype(jnp.bfloat16),
                                 dense_x.astype(jnp.bfloat16), weight, bias)
    out_bf16 = jax.block_until_ready(
        fm_forward(sparse_x, dense_x, weight, bias, cast_inputs_to_bf16=True))
    assert jnp.allclose(out_bf16, ref_bf16, atol=1e-2, rtol=1e-2)

    print("KERNEL_OK")
</pallas_src>

<mosaic_0001>
module attributes {stable_mosaic.version = 11 : i64} {
  func.func @fm_kernel(%arg0: i32, %arg1: memref<1xf32, #tpu.memory_space<smem>>, %arg2: memref<1x32xf32, #tpu.memory_space<vmem>>, %arg3: memref<32x256xf32, #tpu.memory_space<vmem>>, %arg4: memref<64x256xf32, #tpu.memory_space<vmem>>, %arg5: memref<1x256xf32, #tpu.memory_space<vmem>>) attributes {dimension_semantics = [#tpu.dimension_semantics<parallel>], iteration_bounds = array<i64: 4>, scalar_prefetch = 0 : i64, scratch_operands = 0 : i64, tpu.core_type = #tpu.core_type<tc>, window_params = [{transform_indices = @transform_0, window_bounds = array<i64: 1>}, {pipeline_mode = #tpu.pipeline_mode<synchronous>, transform_indices = @transform_1, window_bounds = array<i64: 1, 32>}, {transform_indices = @transform_2, window_bounds = array<i64: 32, 256>}, {transform_indices = @transform_3, window_bounds = array<i64: 64, 256>}, {transform_indices = @transform_4, window_bounds = array<i64: 1, 256>}]} {
    %c0 = arith.constant 0 : index
    %c0_0 = arith.constant 0 : index
    %0 = vector.load %arg4[%c0, %c0_0] : memref<64x256xf32, #tpu.memory_space<vmem>>, vector<16x256xf32>
    %1 = arith.mulf %0, %0 : vector<16x256xf32>
    %c16 = arith.constant 16 : index
    %c0_1 = arith.constant 0 : index
    %2 = vector.load %arg4[%c16, %c0_1] : memref<64x256xf32, #tpu.memory_space<vmem>>, vector<16x256xf32>
    %3 = arith.addf %0, %2 : vector<16x256xf32>
    %4 = arith.mulf %2, %2 : vector<16x256xf32>
    %5 = arith.addf %1, %4 : vector<16x256xf32>
    %c32 = arith.constant 32 : index
    %c0_2 = arith.constant 0 : index
    %6 = vector.load %arg4[%c32, %c0_2] : memref<64x256xf32, #tpu.memory_space<vmem>>, vector<16x256xf32>
    %7 = arith.addf %3, %6 : vector<16x256xf32>
    %8 = arith.mulf %6, %6 : vector<16x256xf32>
    %9 = arith.addf %5, %8 : vector<16x256xf32>
    %c48 = arith.constant 48 : index
    %c0_3 = arith.constant 0 : index
    %10 = vector.load %arg4[%c48, %c0_3] : memref<64x256xf32, #tpu.memory_space<vmem>>, vector<16x256xf32>
    %11 = arith.addf %7, %10 : vector<16x256xf32>
    %12 = arith.mulf %10, %10 : vector<16x256xf32>
    %13 = arith.addf %9, %12 : vector<16x256xf32>
    %14 = arith.mulf %11, %11 : vector<16x256xf32>
    %15 = arith.subf %14, %13 : vector<16x256xf32>
    %cst = arith.constant dense<0.000000e+00> : vector<256xf32>
    %16 = vector.multi_reduction <add>, %15, %cst [0] : vector<16x256xf32> to vector<256xf32>
    %17 = vector.shape_cast %16 : vector<256xf32> to vector<1x256xf32>
    %cst_4 = arith.constant 5.000000e-01 : f32
    %18 = vector.broadcast %cst_4 : f32 to vector<1x256xf32>
    %19 = arith.mulf %18, %17 : vector<1x256xf32>
    %c0_5 = arith.constant 0 : index
    %c0_6 = arith.constant 0 : index
    %20 = vector.load %arg2[%c0_5, %c0_6] : memref<1x32xf32, #tpu.memory_space<vmem>>, vector<1x32xf32>
    %c0_7 = arith.constant 0 : index
    %c0_8 = arith.constant 0 : index
    %21 = vector.load %arg3[%c0_7, %c0_8] : memref<32x256xf32, #tpu.memory_space<vmem>>, vector<32x256xf32>
    %cst_9 = arith.constant dense<0.000000e+00> : vector<1x256xf32>
    %22 = tpu.matmul %20, %21, %cst_9 {dimension_numbers = #tpu.dot_dimension_numbers<[1], [0], [0], [1], [0, 0, 1, 1], [], []>} : vector<1x32xf32>, vector<32x256xf32>, vector<1x256xf32> -> vector<1x256xf32>
    %23 = arith.addf %22, %19 : vector<1x256xf32>
    %c0_10 = arith.constant 0 : index
    %24 = memref.load %arg1[%c0_10] : memref<1xf32, #tpu.memory_space<smem>>
    %25 = vector.broadcast %24 : f32 to vector<1x256xf32>
    %26 = arith.addf %23, %25 : vector<1x256xf32>
    %c0_11 = arith.constant 0 : index
    %c0_12 = arith.constant 0 : index
    %27 = vector.load %arg5[%c0_11, %c0_12] : memref<1x256xf32, #tpu.memory_space<vmem>>, vector<1x256xf32>
    tpu.vector_store %arg5[%c0_11, %c0_12], %26 {strides = array<i32>} : memref<1x256xf32, #tpu.memory_space<vmem>>, vector<1x256xf32>,
    return
  }
  func.func @transform_0(%arg0: i32) -> i32 {
    %c0_i32 = arith.constant 0 : i32
    %c0_i32_0 = arith.constant 0 : i32
    return %c0_i32 : i32
  }
  func.func @transform_1(%arg0: i32) -> (i32, i32) {
    %c0_i32 = arith.constant 0 : i32
    %c0_i32_0 = arith.constant 0 : i32
    %c0_i32_1 = arith.constant 0 : i32
    return %c0_i32, %c0_i32_0 : i32, i32
  }
  func.func @transform_2(%arg0: i32) -> (i32, i32) {
    %c0_i32 = arith.constant 0 : i32
    %c0_i32_0 = arith.constant 0 : i32
    return %c0_i32, %arg0 : i32, i32
  }
  func.func @transform_3(%arg0: i32) -> (i32, i32) {
    %c0_i32 = arith.constant 0 : i32
    %c0_i32_0 = arith.constant 0 : i32
    return %c0_i32, %arg0 : i32, i32
  }
  func.func @transform_4(%arg0: i32) -> (i32, i32) {
    %c0_i32 = arith.constant 0 : i32
    %c0_i32_0 = arith.constant 0 : i32
    return %c0_i32, %arg0 : i32, i32
  }
}

</mosaic_0001>

<llo_original>
// kernel: tpu_custom_call.1
$region0: #{tpu_custom_call.1}
  #allocation0 [shape = 'u32[]', space=smem, size = 0x4, offset = 0x4, fixed_abs, tag = 'smem constant byte address 0x4 - core index']
  #allocation1 [shape = 'u32[72,128]{1,0:T(1,128)}', space=vmem, size = 0x9000, scoped, tag = 'internal scratch']
  #allocation2 [shape = 'f32[1]{0:T(128)S(6)}', space=smem, size = 0x200, scoped, tag = 'scoped memory for tpu_custom_call.1']
  %s0 = inlined_call_operand.<no memory space> [shape: f32[1], index: 0, kind: input, shape index: {}]
  %s1 = inlined_call_operand.vmem [shape: f32[1,32], index: 1, kind: input, shape index: {}]
  %s2 = inlined_call_operand.hbm [shape: f32[32,1000], index: 2, kind: input, shape index: {}]
  %s3 = inlined_call_operand.hbm [shape: f32[64,1000], index: 3, kind: input, shape index: {}]
  %s4 = inlined_call_operand.hbm [shape: f32[1,1000], index: 4, kind: output, shape index: {}]
  %s5 = sld [smem:[#allocation0]]
  $region57: #{tpu_custom_call.1} parent=0
    _
  %s7 = ssub.s32 1, %s5
  %s8 = scalar_select 0, %s7, %s5
  %9 = sst [smem:[#allocation2]] %s0
  $region1: #{tpu_custom_call.1} parent=0
    #allocation3 [shape = 'u8[65536]{0}', space=vmem, size = 0x10000, scoped, tag = 'input window, operand 2']
    #allocation4 [shape = 's32[2]{0}', space=sflag, size = 0x8, scoped, tag = 'scoped memory for tpu_custom_call.1']
    #allocation5 [shape = 's32[2]{0}', space=sflag, size = 0x8, scoped, tag = 'scoped memory for tpu_custom_call.1']
    #allocation6 [shape = 'u8[131072]{0}', space=vmem, size = 0x20000, scoped, tag = 'input window, operand 3']
    #allocation7 [shape = 's32[2]{0}', space=sflag, size = 0x8, scoped, tag = 'scoped memory for tpu_custom_call.1']
    #allocation8 [shape = 'u8[2048]{0}', space=vmem, size = 0x800, scoped, tag = 'output window, operand 0']
    %10 = vsyncpa [#allocation4], 0
    %s11 = scalar_lea.sflag [#allocation4], 1
    %12 = vsyncpa %s11, 0
    %13 = vsyncpa [#allocation7], 0
    %s14 = scalar_lea.sflag [#allocation7], 1
    %15 = vsyncpa %s14, 0
    %16 = vsyncpa [#allocation5], 0
    %s17 = scalar_lea.sflag [#allocation5], 1
    %18 = vsyncpa %s17, 0
    loop: start=0, step=1, limit=6
    $region2: #{tpu_custom_call.1} parent=1 // loop_pre_header
      _
    $region3: #{tpu_custom_call.1} parent=1 // loop_header
      %s20 = sphi 0, %s24
      %p21 = scmp.ge.s32.totalorder %s20, 6
      %s28 = sphi 0, %s28
      %s30 = sphi 0, %s28
      %s31 = sphi 0, %s30
      %s45 = sphi 0, %s31
      %s49 = sphi 0, %s49
      %s51 = sphi 0, %s49
      %s52 = sphi 0, %s51
      %s66 = sphi 0, %s52
      %s72 = sphi 0, %s74
      %s75 = sphi 0, %s72
      %s76 = sphi 0, %s75
      %s92 = sphi 0, %s76
      %s98 = sphi 0, %s100
      %s101 = sphi 0, %s98
      %s102 = sphi 0, %s101
      %s118 = sphi 0, %s102
      %s124 = sphi 0, %s126
      %s127 = sphi 0, %s124
      %s128 = sphi 0, %s127
      %s144 = sphi 0, %s128
    $region4: #{tpu_custom_call.1} parent=1 // loop_header_branch
      %23 = sbr.rel (%p21) target = $region8
    $region5: #{tpu_custom_call.1} parent=1 // loop_body
      %s25 = ssub.s32 %s20, 1
      %s26 = ssub.s32 %s20, 2
      %s27 = sadd.s32 %s20, 1
      %s29 = sadd.s32 %s28, 1
      %p32 = scmp.eq.s32.totalorder %s20, 3
      %p33 = scmp.ne.s32.totalorder %s28, %s30
      %p34 = scmp.eq.s32.totalorder %s20, 0
      %p35 = por %p33, %p34
      %p36 = scmp.ne.s32.totalorder %s28, %s30
      %p37 = scmp.eq.s32.totalorder %s25, 3
      %p38 = por %p36, %p37
      %p39 = scmp.ne.s32.totalorder %s30, %s31
      %p40 = scmp.eq.s32.totalorder %s25, 0
      %p41 = por %p39, %p40
      %p42 = scmp.ne.s32.totalorder %s30, %s31
      %p43 = scmp.eq.s32.totalorder %s26, 3
      %p44 = por %p42, %p43
      %p46 = scmp.ne.s32.totalorder %s31, %s45
      %p47 = scmp.eq.s32.totalorder %s26, 0
      %p48 = por %p46, %p47
      %s50 = sadd.s32 %s49, 1
      %p53 = scmp.eq.s32.totalorder %s20, 3
      %p54 = scmp.ne.s32.totalorder %s49, %s51
      %p55 = scmp.eq.s32.totalorder %s20, 0
      %p56 = por %p54, %p55
      %p57 = scmp.ne.s32.totalorder %s49, %s51
      %p58 = scmp.eq.s32.totalorder %s25, 3
      %p59 = por %p57, %p58
      %p60 = scmp.ne.s32.totalorder %s51, %s52
      %p61 = scmp.eq.s32.totalorder %s25, 0
      %p62 = por %p60, %p61
      %p63 = scmp.ne.s32.totalorder %s51, %s52
      %p64 = scmp.eq.s32.totalorder %s26, 3
      %p65 = por %p63, %p64
      %p67 = scmp.ne.s32.totalorder %s52, %s66
      %p68 = scmp.eq.s32.totalorder %s26, 0
      %p69 = por %p67, %p68
      %s70 = ssub.s32 %s20, %s27
      %p71 = scmp.eq.s32.totalorder %s70, 0
      %s73 = sadd.s32 %s72, 1
      %s74 = scalar_select %p71, %s72, %s73
      %p77 = pneg %p71
      %p78 = scmp.eq.s32.totalorder %s20, 3
      %p79 = por %p77, %p78
      %p80 = scmp.ne.s32.totalorder %s72, %s75
      %p81 = scmp.eq.s32.totalorder %s20, 0
      %p82 = por %p80, %p81
      %p83 = scmp.ne.s32.totalorder %s72, %s75
      %p84 = scmp.eq.s32.totalorder %s25, 3
      %p85 = por %p83, %p84
      %p86 = scmp.ne.s32.totalorder %s75, %s76
      %p87 = scmp.eq.s32.totalorder %s25, 0
      %p88 = por %p86, %p87
      %p89 = scmp.ne.s32.totalorder %s75, %s76
      %p90 = scmp.eq.s32.totalorder %s26, 3
      %p91 = por %p89, %p90
      %p93 = scmp.ne.s32.totalorder %s76, %s92
      %p94 = scmp.eq.s32.totalorder %s26, 0
      %p95 = por %p93, %p94
      %s96 = ssub.s32 %s20, %s27
      %p97 = scmp.eq.s32.totalorder %s96, 0
      %s99 = sadd.s32 %s98, 1
      %s100 = scalar_select %p97, %s98, %s99
      %p103 = pneg %p97
      %p104 = scmp.eq.s32.totalorder %s20, 3
      %p105 = por %p103, %p104
      %p106 = scmp.ne.s32.totalorder %s98, %s101
      %p107 = scmp.eq.s32.totalorder %s20, 0
      %p108 = por %p106, %p107
      %p109 = scmp.ne.s32.totalorder %s98, %s101
      %p110 = scmp.eq.s32.totalorder %s25, 3
      %p111 = por %p109, %p110
      %p112 = scmp.ne.s32.totalorder %s101, %s102
      %p113 = scmp.eq.s32.totalorder %s25, 0
      %p114 = por %p112, %p113
      %p115 = scmp.ne.s32.totalorder %s101, %s102
      %p116 = scmp.eq.s32.totalorder %s26, 3
      %p117 = por %p115, %p116
      %p119 = scmp.ne.s32.totalorder %s102, %s118
      %p120 = scmp.eq.s32.totalorder %s26, 0
      %p121 = por %p119, %p120
      %s122 = ssub.s32 %s20, %s27
      %p123 = scmp.eq.s32.totalorder %s122, 0
      %s125 = sadd.s32 %s124, 1
      %s126 = scalar_select %p123, %s124, %s125
      %p129 = pneg %p123
      %p130 = scmp.eq.s32.totalorder %s20, 3
      %p131 = por %p129, %p130
      %p132 = scmp.ne.s32.totalorder %s124, %s127
      %p133 = scmp.eq.s32.totalorder %s20, 0
      %p134 = por %p132, %p133
      %p135 = scmp.ne.s32.totalorder %s124, %s127
      %p136 = scmp.eq.s32.totalorder %s25, 3
      %p137 = por %p135, %p136
      %p138 = scmp.ne.s32.totalorder %s127, %s128
      %p139 = scmp.eq.s32.totalorder %s25, 0
      %p140 = por %p138, %p139
      %p141 = scmp.ne.s32.totalorder %s127, %s128
      %p142 = scmp.eq.s32.totalorder %s26, 3
      %p143 = por %p141, %p142
      %p145 = scmp.ne.s32.totalorder %s128, %s144
      %p146 = scmp.eq.s32.totalorder %s26, 0
      %p147 = por %p145, %p146
      %p148 = scmp.le.s32.totalorder 1, %s20
      %p149 = scmp.lt.s32.totalorder %s20, 5
      %p150 = pnand %p148, %p149
      %p151 = pneg %p150
      // Predicated region
      $region9: #{tpu_custom_call.1} parent=5 // pred_check
        _
      $region10: #{tpu_custom_call.1} parent=5 // pred_check_branch
        %153 = sbr.rel (%p150) target = $region12
      $region11: #{tpu_custom_call.1} parent=5 // pred_region
        %s154 = ssub.s32 %s20, 1
        // Predicated region
        $region13: #{tpu_custom_call.1} parent=11 // pred_check
          %p155 = pneg %p41
        $region14: #{tpu_custom_call.1} parent=11 // pred_check_branch
          %157 = sbr.rel (%p155) target = $region16
        $region15: #{tpu_custom_call.1} parent=11 // pred_region
          _
        $region16: #{tpu_custom_call.1} parent=11 // pred_fallthru
          _
        // Predicated region
        $region17: #{tpu_custom_call.1} parent=11 // pred_check
          %p158 = pneg %p62
        $region18: #{tpu_custom_call.1} parent=11 // pred_check_branch
          %160 = sbr.rel (%p158) target = $region20
        $region19: #{tpu_custom_call.1} parent=11 // pred_region
          _
        $region20: #{tpu_custom_call.1} parent=11 // pred_fallthru
          _
      $region12: #{tpu_custom_call.1} parent=5 // pred_fallthru
        _
      %p161 = scmp.lt.s32.totalorder %s20, 4
      // Predicated region
      $region21: #{tpu_custom_call.1} parent=5 // pred_check
        %p162 = pneg %p161
      $region22: #{tpu_custom_call.1} parent=5 // pred_check_branch
        %164 = sbr.rel (%p162) target = $region24
      $region23: #{tpu_custom_call.1} parent=5 // pred_region
        // Predicated region
        $region25: #{tpu_custom_call.1} parent=23 // pred_check
          %p165 = pneg %p82
        $region26: #{tpu_custom_call.1} parent=23 // pred_check_branch
          %167 = sbr.rel (%p165) target = $region28
        $region27: #{tpu_custom_call.1} parent=23 // pred_region
          %s168 = sand.u32 %s72, 1
          %s169 = scalar_lea.sflag [#allocation4], %s168
          %s170 = sand.u32 %s72, 1
          %s171 = smul.addr %s170, 64
          %s172 = scalar_lea.vmem [#allocation3], %s171
          %s173 = smul.u32 2, %s20
          %175 = vsyncadd %s169, 0
          %s176 = smul.addr %s173, 8
          %s177 = scalar_lea.hbm %s2, %s176
          %s178 = sshll.u32 %s177, 4
          %s179 = int_to_ptr.hbm [resolvable:$true] %s178
          %s180 = sshll.u32 %s172, 4
          %s181 = int_to_ptr.vmem [resolvable:$true] %s180
          %186 = dma.hbm_to_vmem [thread:$0]  %s179, 1024, %s181, %s169, 1024, 256, 16
        $region28: #{tpu_custom_call.1} parent=23 // pred_fallthru
          _
        // Predicated region
        $region29: #{tpu_custom_call.1} parent=23 // pred_check
          %p187 = pneg %p108
        $region30: #{tpu_custom_call.1} parent=23 // pred_check_branch
          %189 = sbr.rel (%p187) target = $region32
        $region31: #{tpu_custom_call.1} parent=23 // pred_region
          %s190 = sand.u32 %s98, 1
          %s191 = scalar_lea.sflag [#allocation7], %s190
          %s192 = sand.u32 %s98, 1
          %s193 = smul.addr %s192, 128
          %s194 = scalar_lea.vmem [#allocation6], %s193
          %s195 = smul.u32 2, %s20
          %197 = vsyncadd %s191, 0
          %s198 = smul.addr %s195, 8
          %s199 = scalar_lea.hbm %s3, %s198
          %s200 = sshll.u32 %s199, 4
          %s201 = int_to_ptr.hbm [resolvable:$true] %s200
          %s202 = sshll.u32 %s194, 4
          %s203 = int_to_ptr.vmem [resolvable:$true] %s202
          %208 = dma.hbm_to_vmem [thread:$0]  %s201, 2048, %s203, %s191, 1024, 256, 16
        $region32: #{tpu_custom_call.1} parent=23 // pred_fallthru
          _
      $region24: #{tpu_custom_call.1} parent=5 // pred_fallthru
        _
      %p209 = scmp.le.s32.totalorder 1, %s20
      %p210 = scmp.lt.s32.totalorder %s20, 5
      %p211 = pnand %p209, %p210
      %p212 = pneg %p211
      // Predicated region
      $region33: #{tpu_custom_call.1} parent=5 // pred_check
        _
      $region34: #{tpu_custom_call.1} parent=5 // pred_check_branch
        %214 = sbr.rel (%p211) target = $region36
      $region35: #{tpu_custom_call.1} parent=5 // pred_region
        %s215 = ssub.s32 %s20, 1
        %s216 = sand.u32 %s75, 1
        %s217 = scalar_lea.sflag [#allocation4], %s216
        %s218 = sand.u32 %s75, 1
        %s219 = smul.addr %s218, 64
        %s220 = scalar_lea.vmem [#allocation3], %s219
        // Predicated region
        $region37: #{tpu_custom_call.1} parent=35 // pred_check
          %p221 = pneg %p88
        $region38: #{tpu_custom_call.1} parent=35 // pred_check_branch
          %223 = sbr.rel (%p221) target = $region40
        $region39: #{tpu_custom_call.1} parent=35 // pred_region
          %225 = dma.done %s217, 1024
        $region40: #{tpu_custom_call.1} parent=35 // pred_fallthru
          _
        %s226 = sand.u32 %s101, 1
        %s227 = scalar_lea.sflag [#allocation7], %s226
        %s228 = sand.u32 %s101, 1
        %s229 = smul.addr %s228, 128
        %s230 = scalar_lea.vmem [#allocation6], %s229
        // Predicated region
        $region41: #{tpu_custom_call.1} parent=35 // pred_check
          %p231 = pneg %p114
        $region42: #{tpu_custom_call.1} parent=35 // pred_check_branch
          %233 = sbr.rel (%p231) target = $region44
        $region43: #{tpu_custom_call.1} parent=35 // pred_region
          %235 = dma.done %s227, 2048
        $region44: #{tpu_custom_call.1} parent=35 // pred_fallthru
          _
        %p236 = pneg %p41
        %p237 = pneg %p38
        %p238 = pneg %p62
        %p239 = pneg %p59
        %s240 = sand.u32 %s75, 1
        %s241 = scalar_lea.sflag [#allocation4], %s240
        %s242 = sand.u32 %s75, 1
        %s243 = smul.addr %s242, 64
        %s244 = scalar_lea.vmem [#allocation3], %s243
        %p245 = pneg %p88
        %p246 = pneg %p85
        %s247 = sand.u32 %s101, 1
        %s248 = scalar_lea.sflag [#allocation7], %s247
        %s249 = sand.u32 %s101, 1
        %s250 = smul.addr %s249, 128
        %s251 = scalar_lea.vmem [#allocation6], %s250
        %p252 = pneg %p114
        %p253 = pneg %p111
        %p254 = pneg %p140
        %p255 = pneg %p137
        %s256 = sand.u32 %s127, 1
        %s257 = scalar_lea.sflag [#allocation5], %s256
        %s258 = sand.u32 %s127, 1
        %s259 = smul.addr %s258, 2
        %s260 = scalar_lea.vmem [#allocation8], %s259
        %s261 = smul.u32 2, %s25
        %s262 = smul.u32 2, %s25
        %s263 = smul.u32 2, %s25
        %v264 = vld [vmem:[%s230] sm:$0xff]
        %v265 = vld [vmem:[%s230 + $0x8] sm:$0xff]
        %v266 = vld [vmem:[%s230 + $0x10] sm:$0xff]
        %v267 = vld [vmem:[%s230 + $0x18] sm:$0xff]
        %v268 = vmul.f32 %v264, %v264
        %v269 = vmul.f32 %v265, %v265
        %v270 = vmul.f32 %v266, %v266
        %v271 = vmul.f32 %v267, %v267
        %v272 = vld [vmem:[%s230 + $0x20] sm:$0xff]
        %v273 = vld [vmem:[%s230 + $0x28] sm:$0xff]
        %v274 = vld [vmem:[%s230 + $0x30] sm:$0xff]
        %v275 = vld [vmem:[%s230 + $0x38] sm:$0xff]
        %v276 = vadd.f32 %v264, %v272
        %v277 = vadd.f32 %v265, %v273
        %v278 = vadd.f32 %v266, %v274
        %v279 = vadd.f32 %v267, %v275
        %v280 = vmul.f32 %v272, %v272
        %v281 = vmul.f32 %v273, %v273
        %v282 = vmul.f32 %v274, %v274
        %v283 = vmul.f32 %v275, %v275
        %v284 = vadd.f32 %v268, %v280
        %v285 = vadd.f32 %v269, %v281
        %v286 = vadd.f32 %v270, %v282
        %v287 = vadd.f32 %v271, %v283
        %v288 = vld [vmem:[%s230 + $0x40] sm:$0xff]
        %v289 = vld [vmem:[%s230 + $0x48] sm:$0xff]
        %v290 = vld [vmem:[%s230 + $0x50] sm:$0xff]
        %v291 = vld [vmem:[%s230 + $0x58] sm:$0xff]
        %v292 = vadd.f32 %v276, %v288
        %v293 = vadd.f32 %v277, %v289
        %v294 = vadd.f32 %v278, %v290
        %v295 = vadd.f32 %v279, %v291
        %v296 = vmul.f32 %v288, %v288
        %v297 = vmul.f32 %v289, %v289
        %v298 = vmul.f32 %v290, %v290
        %v299 = vmul.f32 %v291, %v291
        %v300 = vadd.f32 %v284, %v296
        %v301 = vadd.f32 %v285, %v297
        %v302 = vadd.f32 %v286, %v298
        %v303 = vadd.f32 %v287, %v299
        %v304 = vld [vmem:[%s230 + $0x60] sm:$0xff]
        %v305 = vld [vmem:[%s230 + $0x68] sm:$0xff]
        %v306 = vld [vmem:[%s230 + $0x70] sm:$0xff]
        %v307 = vld [vmem:[%s230 + $0x78] sm:$0xff]
        %v308 = vadd.f32 %v292, %v304
        %v309 = vadd.f32 %v293, %v305
        %v310 = vadd.f32 %v294, %v306
        %v311 = vadd.f32 %v295, %v307
        %v312 = vmul.f32 %v304, %v304
        %v313 = vmul.f32 %v305, %v305
        %v314 = vmul.f32 %v306, %v306
        %v315 = vmul.f32 %v307, %v307
        %v316 = vadd.f32 %v300, %v312
        %v317 = vadd.f32 %v301, %v313
        %v318 = vadd.f32 %v302, %v314
        %v319 = vadd.f32 %v303, %v315
        %v320 = vmul.f32 %v308, %v308
        %v321 = vmul.f32 %v309, %v309
        %v322 = vmul.f32 %v310, %v310
        %v323 = vmul.f32 %v311, %v311
        %v324 = vsub.f32 %v320, %v316
        %v325 = vsub.f32 %v321, %v317
        %v326 = vsub.f32 %v322, %v318
        %v327 = vsub.f32 %v323, %v319
        %v328 = vadd.f32 %v324, %v326
        %v329 = vrot.slane %v328, 4
        %v330 = vadd.f32 %v328, %v329
        %v331 = vrot.slane %v330, 2
        %v332 = vadd.f32 %v330, %v331
        %v333 = vrot.slane %v332, 1
        %v334 = vadd.f32 %v332, %v333
        %v335 = vadd.f32 %v325, %v327
        %v336 = vrot.slane %v335, 4
        %v337 = vadd.f32 %v335, %v336
        %v338 = vrot.slane %v337, 2
        %v339 = vadd.f32 %v337, %v338
        %v340 = vrot.slane %v339, 1
        %v341 = vadd.f32 %v339, %v340
        %v342 = vmul.f32 %v334, 0.5
        %v343 = vmul.f32 %v341, 0.5
        %v344 = vld [vmem:[%s1] sm:$0x1]
        %v345 = vld [vmem:[%s220] sm:$0xff]
        %v346 = vld [vmem:[%s220 + $0x8] sm:$0xff]
        %v347 = vld [vmem:[%s220 + $0x10] sm:$0xff]
        %v348 = vld [vmem:[%s220 + $0x18] sm:$0xff]
        %v349 = vld [vmem:[%s220 + $0x20] sm:$0xff]
        %v350 = vld [vmem:[%s220 + $0x28] sm:$0xff]
        %v351 = vld [vmem:[%s220 + $0x30] sm:$0xff]
        %v352 = vld [vmem:[%s220 + $0x38] sm:$0xff]
        %vm353 = vcmask 261120
        %v355 = vsel %vm353, %v344, 0
        %357 = vmatpush.msra.mxu0 0.0
        %358 = vmatpush.msra.mxu0 0.0
        %359 = vmatpush.msra.mxu0 0.0
        %360 = vmatpush.msra.mxu0 0.0
        %361 = vmatpush.msra.mxu0 0.0
        %362 = vmatpush.msra.mxu0 0.0
        %363 = vmatpush.msra.mxu0 0.0
        %364 = vmatpush.msra.mxu0 0.0
        %365 = vmatpush.msra.mxu0 0.0
        %366 = vmatpush.msra.mxu0 0.0
        %367 = vmatpush.msra.mxu0 0.0
        %368 = vmatpush.msra.mxu0 0.0
        %369 = vmatpush.msra.mxu0 %v351
        %370 = vmatpush.msra.mxu0 %v349
        %371 = vmatpush.msra.mxu0 %v347
        %372 = vmatpush.msra.mxu0 %v345
        %373 = vmatmul.f32.gmra.mxu0 %v355
        %v374 = vpop.f32.mrf.mxu0
        %v375 = vadd.f32 %v342, %v374
        %376 = vdwg.mxu0
        %377 = vmatpush.msra.mxu0 0.0
        %378 = vmatpush.msra.mxu0 0.0
        %379 = vmatpush.msra.mxu0 0.0
        %380 = vmatpush.msra.mxu0 0.0
        %381 = vmatpush.msra.mxu0 0.0
        %382 = vmatpush.msra.mxu0 0.0
        %383 = vmatpush.msra.mxu0 0.0
        %384 = vmatpush.msra.mxu0 0.0
        %385 = vmatpush.msra.mxu0 0.0
        %386 = vmatpush.msra.mxu0 0.0
        %387 = vmatpush.msra.mxu0 0.0
        %388 = vmatpush.msra.mxu0 0.0
        %389 = vmatpush.msra.mxu0 %v352
        %390 = vmatpush.msra.mxu0 %v350
        %391 = vmatpush.msra.mxu0 %v348
        %392 = vmatpush.msra.mxu0 %v346
        %393 = vmatmul.f32.gmra.mxu0 %v355
        %v394 = vpop.f32.mrf.mxu0
        %v395 = vadd.f32 %v343, %v394
        %396 = vdwg.mxu0
        %s397 = sld [smem:[#allocation2]]
        %v398 = vstv %s397
        %v399 = vadd.f32 %v375, %v398
        %v400 = vadd.f32 %v395, %v398
        %v403 = vrot.slane %v400, 7
        %vm404 = vcmask 1040384
        %v405 = vsel %vm404, %v399, %v403
        %v407 = vlaneseq
        %vm408 = vcmp.ge.s32.totalorder %v407, 0
        %vm409 = vcmp.lt.s32.totalorder %v407, 256
        %vm410 = vmand %vm408, %vm409
        %411 = vst.msk [vmem:[%s260] sm:$0x3] %vm410, %v405
        %s412 = sand.u32 %s127, 1
        %s413 = scalar_lea.sflag [#allocation5], %s412
        %s414 = sand.u32 %s127, 1
        %s415 = smul.addr %s414, 2
        %s416 = scalar_lea.vmem [#allocation8], %s415
        // Predicated region
        $region45: #{tpu_custom_call.1} parent=35 // pred_check
          %p417 = pneg %p137
        $region46: #{tpu_custom_call.1} parent=35 // pred_check_branch
          %419 = sbr.rel (%p417) target = $region48
        $region47: #{tpu_custom_call.1} parent=35 // pred_region
          %s420 = smul.u32 2, %s25
          %422 = vsyncadd %s413, 0
          %s423 = scalar_lea.hbm %s4, %s420
          %s425 = sshll.u32 %s416, 4
          %s426 = int_to_ptr.vmem [resolvable:$true] %s425
          %s427 = sshll.u32 %s423, 4
          %s428 = int_to_ptr.hbm [resolvable:$true] %s427
          %430 = dma.vmem_to_hbm [thread:$0]  %s426, 32, %s428, %s413
        $region48: #{tpu_custom_call.1} parent=35 // pred_fallthru
          _
      $region36: #{tpu_custom_call.1} parent=5 // pred_fallthru
        _
      %p431 = scmp.le.s32.totalorder 2, %s20
      // Predicated region
      $region49: #{tpu_custom_call.1} parent=5 // pred_check
        %p432 = pneg %p431
      $region50: #{tpu_custom_call.1} parent=5 // pred_check_branch
        %434 = sbr.rel (%p432) target = $region52
      $region51: #{tpu_custom_call.1} parent=5 // pred_region
        %s435 = ssub.s32 %s20, 2
        // Predicated region
        $region53: #{tpu_custom_call.1} parent=51 // pred_check
          %p436 = pneg %p143
        $region54: #{tpu_custom_call.1} parent=51 // pred_check_branch
          %438 = sbr.rel (%p436) target = $region56
        $region55: #{tpu_custom_call.1} parent=51 // pred_region
          %s439 = sand.u32 %s128, 1
          %s440 = scalar_lea.sflag [#allocation5], %s439
          %s441 = sand.u32 %s128, 1
          %s442 = smul.addr %s441, 2
          %s443 = scalar_lea.vmem [#allocation8], %s442
          %445 = dma.done %s440, 32
        $region56: #{tpu_custom_call.1} parent=51 // pred_fallthru
          _
      $region52: #{tpu_custom_call.1} parent=5 // pred_fallthru
        _
    $region6: #{tpu_custom_call.1} parent=1 // loop_footer
      %s24 = sadd.s32 1, %s20
    $region7: #{tpu_custom_call.1} parent=1 // loop_footer_branch
      %19 = sbr.rel target = $region3
    $region8: #{tpu_custom_call.1} parent=1 // loop_exit
      _
    %446 = vsyncpa [#allocation4], 1
    %s447 = scalar_lea.sflag [#allocation4], 1
    %448 = vsyncpa %s447, 1
    %449 = vsyncpa [#allocation7], 1
    %s450 = scalar_lea.sflag [#allocation7], 1
    %451 = vsyncpa %s450, 1
    %452 = vsyncpa [#allocation5], 1
    %s453 = scalar_lea.sflag [#allocation5], 1
    %454 = vsyncpa %s453, 1

</llo_original>
